<compile_context>
chip_gen: v7x
topology: tpu7x:2x2x1
jax: 0.10.0
libtpu: 0.0.40
codegen_flags: <defaults>
</compile_context>

<pallas_src>
import jax
import jax.numpy as jnp
from jax import lax
from jax.experimental import pallas as pl
from jax.experimental.pallas import tpu as pltpu


def _round_up(x, m):
    return ((x + m - 1) // m) * m


def _num_tensorcores():
    """Heuristic TensorCores-per-JAX-device (v7x / v4 megacore -> 2)."""
    try:
        kind = jax.devices()[0].device_kind.lower()
    except Exception:
        return 1
    if any(tag in kind for tag in ("v7", "7x", "v4")):
        return 2
    return 1


def _choose_tile_b(batch, num_tc, max_tile=8192):
    """Batch tile: one grid step on single-TC chips, num_tc steps on megacore
    parts; always a sublane (8) multiple.  Per-step VMEM working set is
    ~tile_b * 0.3 KiB (+ ~20 KiB of tables), far under even v7x's budget."""
    b8 = _round_up(max(batch, 8), 8)
    if num_tc <= 1 or batch <= 64:
        return min(b8, max_tile)
    return min(_round_up(pl.cdiv(batch, num_tc), 8), max_tile)


def _fused_kernel(idx_ref, cs_tbl_ref, cq_tbl_ref, w_ref, b_ref,
                  hash_ref, cq_ref):
    # idx_ref   : (tile_b, 1) int32   batch indices (padding rows carry 0)
    # cs_tbl_ref: (num_seq, H) f32    corp_self.weight   (whole table)
    # cq_tbl_ref: (num_seq, H) f32    corp_query.weight  (whole table)
    # w_ref     : (D, H)       f32    hash_linear1.weight (native PyTorch layout)
    # b_ref     : (1, D)       f32    hash_linear1.bias
    # hash_ref  : (tile_b, D)  f32    tanh hash codes
    # cq_ref    : (tile_b, H)  f32    gathered query embeddings
    num_seq = cs_tbl_ref.shape[0]
    tile_b = idx_ref.shape[0]

    # (1) Affine + tanh hoisted onto the tiny table (num_seq rows instead of
    #     B rows); contracts H with H directly, no transposed weight needed.
    table_hash = jnp.tanh(
        lax.dot_general(cs_tbl_ref[...], w_ref[...],
                        dimension_numbers=(((1,), (1,)), ((), ())),
                        preferred_element_type=jnp.float32)
        + b_ref[...])                                            # (num_seq, D)

    # (2) Exact one-hot row-gathers of both tables on the MXU.
    idx = idx_ref[...]                                           # (tile_b, 1)
    cols = lax.broadcasted_iota(jnp.int32, (tile_b, num_seq), 1)
    one_hot = (cols == idx).astype(jnp.float32)                  # (tile_b, num_seq)

    hash_ref[...] = jnp.dot(one_hot, table_hash,
                            preferred_element_type=jnp.float32)  # (tile_b, D)
    cq_ref[...] = jnp.dot(one_hot, cq_tbl_ref[...],
                          preferred_element_type=jnp.float32)    # (tile_b, H)


def hash_code_generator_forward(corp_batch, corp_self_w, corp_query_w,
                                lin_w, lin_b, *, tile_b=None):
    """Fused Pallas implementation of HashCodeGenerator.forward.

    corp_batch   : int (B,)             indices into the embedding tables
    corp_self_w  : f32 (num_seq, H)     corp_self.weight
    corp_query_w : f32 (num_seq, H)     corp_query.weight
    lin_w        : f32 (D, H)           hash_linear1.weight (PyTorch layout)
    lin_b        : f32 (D,)             hash_linear1.bias
    returns (cs_hashcodes (B, D), cq_embs (B, H))
    """
    corp_batch = corp_batch.astype(jnp.int32)
    B = corp_batch.shape[0]
    num_seq, H = corp_self_w.shape
    D = lin_w.shape[0]

    if tile_b is None:
        tile_b = _choose_tile_b(B, _num_tensorcores())
    tile_b = max(8, (int(tile_b) // 8) * 8)
    B_pad = _round_up(B, tile_b)

    # Pad indices with a valid index (0); padded rows are sliced off below.
    # (Note: out-of-range indices yield all-zero rows here, whereas torch's
    #  nn.Embedding would raise — same clamping caveat as jnp.take.)
    idx = corp_batch
    if B_pad != B:
        idx = jnp.pad(idx, (0, B_pad - B))
    idx_col = idx.reshape(B_pad, 1)

    b2 = lin_b.reshape(1, D)                                     # 2-D for TPU layout

    grid = (B_pad // tile_b,)
    cost = pl.CostEstimate(
        flops=2 * num_seq * H * D + 2 * B_pad * num_seq * (D + H),
        transcendentals=num_seq * D,
        bytes_accessed=4 * (B_pad + 2 * num_seq * H + D * H + D
                            + B_pad * (D + H)))

    hash_pad, cq_pad = pl.pallas_call(
        _fused_kernel,
        out_shape=(jax.ShapeDtypeStruct((B_pad, D), jnp.float32),
                   jax.ShapeDtypeStruct((B_pad, H), jnp.float32)),
        grid_spec=pl.GridSpec(
            grid=grid,
            in_specs=[
                pl.BlockSpec((tile_b, 1), lambda i: (i, 0)),      # index tile
                pl.BlockSpec((num_seq, H), lambda i: (0, 0)),     # self table (whole)
                pl.BlockSpec((num_seq, H), lambda i: (0, 0)),     # query table (whole)
                pl.BlockSpec((D, H), lambda i: (0, 0)),           # weight (whole)
                pl.BlockSpec((1, D), lambda i: (0, 0)),           # bias
            ],
            out_specs=(pl.BlockSpec((tile_b, D), lambda i: (i, 0)),
                       pl.BlockSpec((tile_b, H), lambda i: (i, 0))),
        ),
        compiler_params=pltpu.CompilerParams(
            dimension_semantics=("parallel",)),
        cost_estimate=cost,
    )(idx_col, corp_self_w, corp_query_w, lin_w, b2)

    if B_pad != B:
        return hash_pad[:B], cq_pad[:B]
    return hash_pad, cq_pad


if __name__ == "__main__":
    # Small shapes consistent with the module:
    #   num_corp = 64, hidden_dim = 32, hash_dim = 32, batch = 256
    num_seq = 64
    hidden_dim = 32
    hash_dim = 32
    batch = 256

    key = jax.random.PRNGKey(0)
    k1, k2, k3, k4, k5 = jax.random.split(key, 5)

    # Deterministic "parameters" (shapes from __init__):
    corp_self_w = jax.random.normal(k1, (num_seq, hidden_dim), jnp.float32)
    corp_query_w = jax.random.normal(k2, (num_seq, hidden_dim), jnp.float32)
    # nn.init.normal_(hash_linear1.weight) -> std-normal weight
    lin_w = jax.random.normal(k3, (hash_dim, hidden_dim), jnp.float32)
    # nn.Linear default bias ~ U(-1/sqrt(H), 1/sqrt(H)), deterministic here
    bound = 1.0 / jnp.sqrt(jnp.float32(hidden_dim))
    lin_b = jax.random.uniform(k4, (hash_dim,), jnp.float32, -bound, bound)

    corp_batch = jax.random.randint(k5, (batch,), 0, num_seq, jnp.int32)

    fwd = jax.jit(hash_code_generator_forward)
    cs_hashcodes, cq_embs = fwd(corp_batch, corp_self_w, corp_query_w,
                                lin_w, lin_b)
    jax.block_until_ready((cs_hashcodes, cq_embs))

    # Reference check (plain JAX) for the forward semantics.
    cs_ref = jnp.take(corp_self_w, corp_batch, axis=0)
    ref_hash = jnp.tanh(cs_ref @ lin_w.T + lin_b)
    ref_cq = jnp.take(corp_query_w, corp_batch, axis=0)
    assert cs_hashcodes.shape == (batch, hash_dim)
    assert cq_embs.shape == (batch, hidden_dim)
    assert jnp.allclose(cs_hashcodes, ref_hash, atol=1e-5)
    assert jnp.allclose(cq_embs, ref_cq, atol=1e-5)

    print("KERNEL_OK")
</pallas_src>

<mosaic_0001>
module attributes {stable_mosaic.version = 11 : i64} {
  func.func @_fused_kernel(%arg0: i32, %arg1: memref<256x1xi32, #tpu.memory_space<vmem>>, %arg2: memref<64x32xf32, #tpu.memory_space<vmem>>, %arg3: memref<64x32xf32, #tpu.memory_space<vmem>>, %arg4: memref<32x32xf32, #tpu.memory_space<vmem>>, %arg5: memref<1x32xf32, #tpu.memory_space<vmem>>, %arg6: memref<256x32xf32, #tpu.memory_space<vmem>>, %arg7: memref<256x32xf32, #tpu.memory_space<vmem>>) attributes {dimension_semantics = [#tpu.dimension_semantics<parallel>], iteration_bounds = array<i64: 1>, scalar_prefetch = 0 : i64, scratch_operands = 0 : i64, tpu.core_type = #tpu.core_type<tc>, window_params = [{transform_indices = @transform_0, window_bounds = array<i64: 256, 1>}, {pipeline_mode = #tpu.pipeline_mode<synchronous>, transform_indices = @transform_1, window_bounds = array<i64: 64, 32>}, {pipeline_mode = #tpu.pipeline_mode<synchronous>, transform_indices = @transform_2, window_bounds = array<i64: 64, 32>}, {pipeline_mode = #tpu.pipeline_mode<synchronous>, transform_indices = @transform_3, window_bounds = array<i64: 32, 32>}, {pipeline_mode = #tpu.pipeline_mode<synchronous>, transform_indices = @transform_4, window_bounds = array<i64: 1, 32>}, {transform_indices = @transform_5, window_bounds = array<i64: 256, 32>}, {transform_indices = @transform_6, window_bounds = array<i64: 256, 32>}]} {
    %c0 = arith.constant 0 : index
    %c0_0 = arith.constant 0 : index
    %0 = vector.load %arg2[%c0, %c0_0] : memref<64x32xf32, #tpu.memory_space<vmem>>, vector<64x32xf32>
    %c0_1 = arith.constant 0 : index
    %c0_2 = arith.constant 0 : index
    %1 = vector.load %arg4[%c0_1, %c0_2] : memref<32x32xf32, #tpu.memory_space<vmem>>, vector<32x32xf32>
    %cst = arith.constant dense<0.000000e+00> : vector<64x32xf32>
    %2 = tpu.matmul %0, %1, %cst {dimension_numbers = #tpu.dot_dimension_numbers<[1], [1], [0], [0], [0, 0, 1, 0], [], []>} : vector<64x32xf32>, vector<32x32xf32>, vector<64x32xf32> -> vector<64x32xf32>
    %c0_3 = arith.constant 0 : index
    %c0_4 = arith.constant 0 : index
    %3 = vector.load %arg5[%c0_3, %c0_4] : memref<1x32xf32, #tpu.memory_space<vmem>>, vector<1x32xf32>
    %4 = vector.broadcast %3 : vector<1x32xf32> to vector<64x32xf32>
    %5 = arith.addf %2, %4 : vector<64x32xf32>
    %6 = math.tanh %5 : vector<64x32xf32>
    %c0_5 = arith.constant 0 : index
    %c0_6 = arith.constant 0 : index
    %7 = vector.load %arg1[%c0_5, %c0_6] : memref<256x1xi32, #tpu.memory_space<vmem>>, vector<256x1xi32>
    %8 = tpu.iota {dimensions = array<i32: 1>} : vector<256x64xi32>
    %9 = vector.broadcast %7 : vector<256x1xi32> to vector<256x64xi32>
    %10 = arith.cmpi eq, %8, %9 : vector<256x64xi32>
    %11 = arith.extui %10 : vector<256x64xi1> to vector<256x64xi32>
    %12 = arith.sitofp %11 : vector<256x64xi32> to vector<256x64xf32>
    %cst_7 = arith.constant dense<0.000000e+00> : vector<256x32xf32>
    %13 = tpu.matmul %12, %6, %cst_7 {dimension_numbers = #tpu.dot_dimension_numbers<[1], [0], [0], [1], [0, 0, 1, 1], [], []>} : vector<256x64xf32>, vector<64x32xf32>, vector<256x32xf32> -> vector<256x32xf32>
    %c0_8 = arith.constant 0 : index
    %c0_9 = arith.constant 0 : index
    %14 = vector.load %arg6[%c0_8, %c0_9] : memref<256x32xf32, #tpu.memory_space<vmem>>, vector<256x32xf32>
    tpu.vector_store %arg6[%c0_8, %c0_9], %13 {strides = array<i32>} : memref<256x32xf32, #tpu.memory_space<vmem>>, vector<256x32xf32>,
    %c0_10 = arith.constant 0 : index
    %c0_11 = arith.constant 0 : index
    %15 = vector.load %arg3[%c0_10, %c0_11] : memref<64x32xf32, #tpu.memory_space<vmem>>, vector<64x32xf32>
    %cst_12 = arith.constant dense<0.000000e+00> : vector<256x32xf32>
    %16 = tpu.matmul %12, %15, %cst_12 {dimension_numbers = #tpu.dot_dimension_numbers<[1], [0], [0], [1], [0, 0, 1, 1], [], []>} : vector<256x64xf32>, vector<64x32xf32>, vector<256x32xf32> -> vector<256x32xf32>
    %c0_13 = arith.constant 0 : index
    %c0_14 = arith.constant 0 : index
    %17 = vector.load %arg7[%c0_13, %c0_14] : memref<256x32xf32, #tpu.memory_space<vmem>>, vector<256x32xf32>
    tpu.vector_store %arg7[%c0_13, %c0_14], %16 {strides = array<i32>} : memref<256x32xf32, #tpu.memory_space<vmem>>, vector<256x32xf32>,
    return
  }
  func.func @transform_0(%arg0: i32) -> (i32, i32) {
    %c0_i32 = arith.constant 0 : i32
    %c0_i32_0 = arith.constant 0 : i32
    return %arg0, %c0_i32 : i32, i32
  }
  func.func @transform_1(%arg0: i32) -> (i32, i32) {
    %c0_i32 = arith.constant 0 : i32
    %c0_i32_0 = arith.constant 0 : i32
    %c0_i32_1 = arith.constant 0 : i32
    return %c0_i32, %c0_i32_0 : i32, i32
  }
  func.func @transform_2(%arg0: i32) -> (i32, i32) {
    %c0_i32 = arith.constant 0 : i32
    %c0_i32_0 = arith.constant 0 : i32
    %c0_i32_1 = arith.constant 0 : i32
    return %c0_i32, %c0_i32_0 : i32, i32
  }
  func.func @transform_3(%arg0: i32) -> (i32, i32) {
    %c0_i32 = arith.constant 0 : i32
    %c0_i32_0 = arith.constant 0 : i32
    %c0_i32_1 = arith.constant 0 : i32
    return %c0_i32, %c0_i32_0 : i32, i32
  }
  func.func @transform_4(%arg0: i32) -> (i32, i32) {
    %c0_i32 = arith.constant 0 : i32
    %c0_i32_0 = arith.constant 0 : i32
    %c0_i32_1 = arith.constant 0 : i32
    return %c0_i32, %c0_i32_0 : i32, i32
  }
  func.func @transform_5(%arg0: i32) -> (i32, i32) {
    %c0_i32 = arith.constant 0 : i32
    %c0_i32_0 = arith.constant 0 : i32
    return %arg0, %c0_i32 : i32, i32
  }
  func.func @transform_6(%arg0: i32) -> (i32, i32) {
    %c0_i32 = arith.constant 0 : i32
    %c0_i32_0 = arith.constant 0 : i32
    return %arg0, %c0_i32 : i32, i32
  }
}

</mosaic_0001>

<llo_original>
// kernel: hash_code_generator_forward.1
$region0: #{hash_code_generator_forward.1}
  #allocation0 [shape = 'u32[]', space=smem, size = 0x4, offset = 0x4, fixed_abs, tag = 'smem constant byte address 0x4 - core index']
  #allocation1 [shape = 'u32[144,128]{1,0:T(1,128)}', space=vmem, size = 0x12000, scoped, tag = 'internal scratch']
  %s0 = inlined_call_operand.vmem [shape: s32[256,1], index: 0, kind: input, shape index: {}]
  %s1 = inlined_call_operand.vmem [shape: f32[64,32], index: 1, kind: input, shape index: {}]
  %s2 = inlined_call_operand.vmem [shape: f32[64,32], index: 2, kind: input, shape index: {}]
  %s3 = inlined_call_operand.vmem [shape: f32[32,32], index: 3, kind: input, shape index: {}]
  %s4 = inlined_call_operand.vmem [shape: f32[1,32], index: 4, kind: input, shape index: {}]
  %s5 = inlined_call_operand.vmem [shape: f32[256,32], index: 5, kind: output, shape index: {0}]
  %s6 = inlined_call_operand.vmem [shape: f32[256,32], index: 6, kind: output, shape index: {1}]
  %7 = xla_tuple %s5, %s6
  %s8 = sld [smem:[#allocation0]]
  $region38: #{hash_code_generator_forward.1} parent=0
    _
  %s10 = ssub.s32 1, %s8
  %s11 = scalar_select 0, %s10, %s8
  // Predicated region
  $region2: #{hash_code_generator_forward.1} parent=0 // pred_check
    _
  $region3: #{hash_code_generator_forward.1} parent=0 // pred_check_branch
    %13 = sbr.rel (0) target = $region5
  $region4: #{hash_code_generator_forward.1} parent=0 // pred_region
    _
  $region5: #{hash_code_generator_forward.1} parent=0 // pred_fallthru
    _
  // Predicated region
  $region6: #{hash_code_generator_forward.1} parent=0 // pred_check
    _
  $region7: #{hash_code_generator_forward.1} parent=0 // pred_check_branch
    %15 = sbr.rel (0) target = $region9
  $region8: #{hash_code_generator_forward.1} parent=0 // pred_region
    _
  $region9: #{hash_code_generator_forward.1} parent=0 // pred_fallthru
    _
  // Predicated region
  $region10: #{hash_code_generator_forward.1} parent=0 // pred_check
    _
  $region11: #{hash_code_generator_forward.1} parent=0 // pred_check_branch
    %17 = sbr.rel (0) target = $region13
  $region12: #{hash_code_generator_forward.1} parent=0 // pred_region
    _
  $region13: #{hash_code_generator_forward.1} parent=0 // pred_fallthru
    _
  // Predicated region
  $region14: #{hash_code_generator_forward.1} parent=0 // pred_check
    _
  $region15: #{hash_code_generator_forward.1} parent=0 // pred_check_branch
    %19 = sbr.rel (0) target = $region17
  $region16: #{hash_code_generator_forward.1} parent=0 // pred_region
    _
  $region17: #{hash_code_generator_forward.1} parent=0 // pred_fallthru
    _
  // Predicated region
  $region18: #{hash_code_generator_forward.1} parent=0 // pred_check
    _
  $region19: #{hash_code_generator_forward.1} parent=0 // pred_check_branch
    %21 = sbr.rel (0) target = $region21
  $region20: #{hash_code_generator_forward.1} parent=0 // pred_region
    _
  $region21: #{hash_code_generator_forward.1} parent=0 // pred_fallthru
    _
  %v22 = vld [vmem:[%s1] sm:$0xff]
  %v23 = vld [vmem:[%s1 + $0x8] sm:$0xff]
  %v24 = vld [vmem:[%s1 + $0x10] sm:$0xff]
  %v25 = vld [vmem:[%s1 + $0x18] sm:$0xff]
  %v26 = vld [vmem:[%s1 + $0x20] sm:$0xff]
  %v27 = vld [vmem:[%s1 + $0x28] sm:$0xff]
  %v28 = vld [vmem:[%s1 + $0x30] sm:$0xff]
  %v29 = vld [vmem:[%s1 + $0x38] sm:$0xff]
  %v30 = vld [vmem:[%s3] sm:$0xff]
  %v31 = vld [vmem:[%s3 + $0x8] sm:$0xff]
  %v32 = vld [vmem:[%s3 + $0x10] sm:$0xff]
  %v33 = vld [vmem:[%s3 + $0x18] sm:$0xff]
  %v34 = vld [vmem:[%s4] sm:$0x1]
  %v36 = vlaneseq
  %v37 = vshrl.u32 %v36, 7
  %v38 = vsub.s32 0, %v37
  %v39 = vrot.slane %v34, %v38
  %vm41 = vcmask 261120
  %v43 = vsel %vm41, %v22, 0
  %v46 = vsel %vm41, %v23, 0
  %v49 = vsel %vm41, %v24, 0
  %v52 = vsel %vm41, %v25, 0
  %v55 = vsel %vm41, %v26, 0
  %v58 = vsel %vm41, %v27, 0
  %v61 = vsel %vm41, %v28, 0
  %v64 = vsel %vm41, %v29, 0
  %v67 = vsel %vm41, %v30, 0
  %v70 = vsel %vm41, %v31, 0
  %v73 = vsel %vm41, %v32, 0
  %v76 = vsel %vm41, %v33, 0
  %78 = vmatprep.subr.mxu0 0.0
  %79 = vmatpush1.xpose.msra.mxu0 %v67
  %80 = vmatprep.subr.mxu0 0.0
  %81 = vmatpush1.xpose.msra.mxu0 %v70
  %82 = vmatprep.subr.mxu0 0.0
  %83 = vmatpush1.xpose.msra.mxu0 %v73
  %84 = vmatprep.subr.mxu0 0.0
  %85 = vmatpush1.xpose.msra.mxu0 %v76
  %86 = vmatprep.subr.mxu0 0.0
  %87 = vmatpush1.xpose.msra.mxu0 0.0
  %88 = vmatprep.subr.mxu0 0.0
  %89 = vmatpush1.xpose.msra.mxu0 0.0
  %90 = vmatprep.subr.mxu0 0.0
  %91 = vmatpush1.xpose.msra.mxu0 0.0
  %92 = vmatprep.subr.mxu0 0.0
  %93 = vmatpush1.xpose.msra.mxu0 0.0
  %94 = vmatprep.subr.mxu0 0.0
  %95 = vmatpush1.xpose.msra.mxu0 0.0
  %96 = vmatprep.subr.mxu0 0.0
  %97 = vmatpush1.xpose.msra.mxu0 0.0
  %98 = vmatprep.subr.mxu0 0.0
  %99 = vmatpush1.xpose.msra.mxu0 0.0
  %100 = vmatprep.subr.mxu0 0.0
  %101 = vmatpush1.xpose.msra.mxu0 0.0
  %102 = vmatprep.subr.mxu0 0.0
  %103 = vmatpush1.xpose.msra.mxu0 0.0
  %104 = vmatprep.subr.mxu0 0.0
  %105 = vmatpush1.xpose.msra.mxu0 0.0
  %106 = vmatprep.subr.mxu0 0.0
  %107 = vmatpush1.xpose.msra.mxu0 0.0
  %108 = vmatprep.subr.mxu0 0.0
  %109 = vmatpush1.xpose.msra.mxu0 0.0
  %110 = vmatprep.subr.mxu0 0.0
  %111 = vmatpush1.xpose.msra.mxu0 0.0
  %112 = vmatprep.subr.mxu0 0.0
  %113 = vmatpush1.xpose.msra.mxu0 0.0
  %114 = vmatprep.subr.mxu0 0.0
  %115 = vmatpush1.xpose.msra.mxu0 0.0
  %116 = vmatprep.subr.mxu0 0.0
  %117 = vmatpush1.xpose.msra.mxu0 0.0
  %118 = vmatprep.subr.mxu0 0.0
  %119 = vmatpush1.xpose.msra.mxu0 0.0
  %120 = vmatprep.subr.mxu0 0.0
  %121 = vmatpush1.xpose.msra.mxu0 0.0
  %122 = vmatprep.subr.mxu0 0.0
  %123 = vmatpush1.xpose.msra.mxu0 0.0
  %124 = vmatprep.subr.mxu0 0.0
  %125 = vmatpush1.xpose.msra.mxu0 0.0
  %126 = vmatprep.subr.mxu0 0.0
  %127 = vmatpush1.xpose.msra.mxu0 0.0
  %128 = vmatprep.subr.mxu0 0.0
  %129 = vmatpush1.xpose.msra.mxu0 0.0
  %130 = vmatprep.subr.mxu0 0.0
  %131 = vmatpush1.xpose.msra.mxu0 0.0
  %132 = vmatprep.subr.mxu0 0.0
  %133 = vmatpush1.xpose.msra.mxu0 0.0
  %134 = vmatprep.subr.mxu0 0.0
  %135 = vmatpush1.xpose.msra.mxu0 0.0
  %136 = vmatprep.subr.mxu0 0.0
  %137 = vmatpush1.xpose.msra.mxu0 0.0
  %138 = vmatprep.subr.mxu0 0.0
  %139 = vmatpush1.xpose.msra.mxu0 0.0
  %140 = vmatprep.subr.mxu0 0.0
  %141 = vmatpush1.xpose.msra.mxu0 0.0
  %142 = vmatprep.mubr.f32.mxu0 0.0
  %143 = vmatmul.mubr.f32.gmra.mrb[0].mxu0 %v43
  %v144 = vpop.f32.mrb[0].mxu0
  %v145 = vadd.f32 %v39, %v144
  %v146 = vpop.f32.mrb[0].mxu0
  %147 = vmatprep.mubr.f32.mxu0 0.0
  %148 = vmatmul.mubr.f32.gmra.mrb[0].mxu0 %v46
  %v149 = vpop.f32.mrb[0].mxu0
  %v150 = vadd.f32 %v39, %v149
  %v151 = vpop.f32.mrb[0].mxu0
  %152 = vmatprep.mubr.f32.mxu0 0.0
  %153 = vmatmul.mubr.f32.gmra.mrb[0].mxu0 %v49
  %v154 = vpop.f32.mrb[0].mxu0
  %v155 = vadd.f32 %v39, %v154
  %v156 = vpop.f32.mrb[0].mxu0
  %157 = vmatprep.mubr.f32.mxu0 0.0
  %158 = vmatmul.mubr.f32.gmra.mrb[0].mxu0 %v52
  %v159 = vpop.f32.mrb[0].mxu0
  %v160 = vadd.f32 %v39, %v159
  %v161 = vpop.f32.mrb[0].mxu0
  %162 = vmatprep.mubr.f32.mxu0 0.0
  %163 = vmatmul.mubr.f32.gmra.mrb[0].mxu0 %v55
  %v164 = vpop.f32.mrb[0].mxu0
  %v165 = vadd.f32 %v39, %v164
  %v166 = vpop.f32.mrb[0].mxu0
  %167 = vmatprep.mubr.f32.mxu0 0.0
  %168 = vmatmul.mubr.f32.gmra.mrb[0].mxu0 %v58
  %v169 = vpop.f32.mrb[0].mxu0
  %v170 = vadd.f32 %v39, %v169
  %v171 = vpop.f32.mrb[0].mxu0
  %172 = vmatprep.mubr.f32.mxu0 0.0
  %173 = vmatmul.mubr.f32.gmra.mrb[0].mxu0 %v61
  %v174 = vpop.f32.mrb[0].mxu0
  %v175 = vadd.f32 %v39, %v174
  %v176 = vpop.f32.mrb[0].mxu0
  %177 = vmatprep.mubr.f32.mxu0 0.0
  %178 = vmatmul.mubr.f32.gmra.mrb[0].mxu0 %v64
  %v179 = vpop.f32.mrb[0].mxu0
  %v180 = vadd.f32 %v39, %v179
  %v181 = vpop.f32.mrb[0].mxu0
  %182 = vdwg.mxu0
  %v183 = vtanh.pop %v145
  %v184 = vtanh.pop %v150
  %v185 = vtanh.pop %v155
  %v186 = vtanh.pop %v160
  %v187 = vtanh.pop %v165
  %v188 = vtanh.pop %v170
  %v189 = vtanh.pop %v175
  %v190 = vtanh.pop %v180
  %v191 = vld [vmem:[%s0] sm:$0xff]
  %v192 = vld [vmem:[%s0 + $0x8] sm:$0xff]
  %v193 = vld [vmem:[%s0 + $0x10] sm:$0xff]
  %v194 = vld [vmem:[%s0 + $0x18] sm:$0xff]
  %v195 = vld [vmem:[%s0 + $0x20] sm:$0xff]
  %v196 = vld [vmem:[%s0 + $0x28] sm:$0xff]
  %v197 = vld [vmem:[%s0 + $0x30] sm:$0xff]
  %v198 = vld [vmem:[%s0 + $0x38] sm:$0xff]
  %v199 = vld [vmem:[%s0 + $0x40] sm:$0xff]
  %v200 = vld [vmem:[%s0 + $0x48] sm:$0xff]
  %v201 = vld [vmem:[%s0 + $0x50] sm:$0xff]
  %v202 = vld [vmem:[%s0 + $0x58] sm:$0xff]
  %v203 = vld [vmem:[%s0 + $0x60] sm:$0xff]
  %v204 = vld [vmem:[%s0 + $0x68] sm:$0xff]
  %v205 = vld [vmem:[%s0 + $0x70] sm:$0xff]
  %v206 = vld [vmem:[%s0 + $0x78] sm:$0xff]
  %v207 = vld [vmem:[%s0 + $0x80] sm:$0xff]
  %v208 = vld [vmem:[%s0 + $0x88] sm:$0xff]
  %v209 = vld [vmem:[%s0 + $0x90] sm:$0xff]
  %v210 = vld [vmem:[%s0 + $0x98] sm:$0xff]
  %v211 = vld [vmem:[%s0 + $0xa0] sm:$0xff]
  %v212 = vld [vmem:[%s0 + $0xa8] sm:$0xff]
  %v213 = vld [vmem:[%s0 + $0xb0] sm:$0xff]
  %v214 = vld [vmem:[%s0 + $0xb8] sm:$0xff]
  %v215 = vld [vmem:[%s0 + $0xc0] sm:$0xff]
  %v216 = vld [vmem:[%s0 + $0xc8] sm:$0xff]
  %v217 = vld [vmem:[%s0 + $0xd0] sm:$0xff]
  %v218 = vld [vmem:[%s0 + $0xd8] sm:$0xff]
  %v219 = vld [vmem:[%s0 + $0xe0] sm:$0xff]
  %v220 = vld [vmem:[%s0 + $0xe8] sm:$0xff]
  %v221 = vld [vmem:[%s0 + $0xf0] sm:$0xff]
  %v222 = vld [vmem:[%s0 + $0xf8] sm:$0xff]
  %v223 = vlaneseq
  %v224 = vand.u32 %v223, 127
  %225 = vset.pattern.permute.xlu0 0
  %226 = vperm.xlu0 %225, %v191
  %v227 = vpop.permute.xlu0 %226
  %228 = vset.pattern.permute.xlu0 0
  %229 = vperm.xlu0 %228, %v192
  %v230 = vpop.permute.xlu0 %229
  %231 = vset.pattern.permute.xlu0 0
  %232 = vperm.xlu0 %231, %v193
  %v233 = vpop.permute.xlu0 %232
  %234 = vset.pattern.permute.xlu0 0
  %235 = vperm.xlu0 %234, %v194
  %v236 = vpop.permute.xlu0 %235
  %237 = vset.pattern.permute.xlu0 0
  %238 = vperm.xlu0 %237, %v195
  %v239 = vpop.permute.xlu0 %238
  %240 = vset.pattern.permute.xlu0 0
  %241 = vperm.xlu0 %240, %v196
  %v242 = vpop.permute.xlu0 %241
  %243 = vset.pattern.permute.xlu0 0
  %244 = vperm.xlu0 %243, %v197
  %v245 = vpop.permute.xlu0 %244
  %246 = vset.pattern.permute.xlu0 0
  %247 = vperm.xlu0 %246, %v198
  %v248 = vpop.permute.xlu0 %247
  %249 = vset.pattern.permute.xlu0 0
  %250 = vperm.xlu0 %249, %v199
  %v251 = vpop.permute.xlu0 %250
  %252 = vset.pattern.permute.xlu0 0
  %253 = vperm.xlu0 %252, %v200
  %v254 = vpop.permute.xlu0 %253
  %255 = vset.pattern.permute.xlu0 0
  %256 = vperm.xlu0 %255, %v201
  %v257 = vpop.permute.xlu0 %256
  %258 = vset.pattern.permute.xlu0 0
  %259 = vperm.xlu0 %258, %v202
  %v260 = vpop.permute.xlu0 %259
  %261 = vset.pattern.permute.xlu0 0
  %262 = vperm.xlu0 %261, %v203
  %v263 = vpop.permute.xlu0 %262
  %264 = vset.pattern.permute.xlu0 0
  %265 = vperm.xlu0 %264, %v204
  %v266 = vpop.permute.xlu0 %265
  %267 = vset.pattern.permute.xlu0 0
  %268 = vperm.xlu0 %267, %v205
  %v269 = vpop.permute.xlu0 %268
  %270 = vset.pattern.permute.xlu0 0
  %271 = vperm.xlu0 %270, %v206
  %v272 = vpop.permute.xlu0 %271
  %273 = vset.pattern.permute.xlu0 0
  %274 = vperm.xlu0 %273, %v207
  %v275 = vpop.permute.xlu0 %274
  %276 = vset.pattern.permute.xlu0 0
  %277 = vperm.xlu0 %276, %v208
  %v278 = vpop.permute.xlu0 %277
  %279 = vset.pattern.permute.xlu0 0
  %280 = vperm.xlu0 %279, %v209
  %v281 = vpop.permute.xlu0 %280
  %282 = vset.pattern.permute.xlu0 0
  %283 = vperm.xlu0 %282, %v210
  %v284 = vpop.permute.xlu0 %283
  %285 = vset.pattern.permute.xlu0 0
  %286 = vperm.xlu0 %285, %v211
  %v287 = vpop.permute.xlu0 %286
  %288 = vset.pattern.permute.xlu0 0
  %289 = vperm.xlu0 %288, %v212
  %v290 = vpop.permute.xlu0 %289
  %291 = vset.pattern.permute.xlu0 0
  %292 = vperm.xlu0 %291, %v213
  %v293 = vpop.permute.xlu0 %292
  %294 = vset.pattern.permute.xlu0 0
  %295 = vperm.xlu0 %294, %v214
  %v296 = vpop.permute.xlu0 %295
  %297 = vset.pattern.permute.xlu0 0
  %298 = vperm.xlu0 %297, %v215
  %v299 = vpop.permute.xlu0 %298
  %300 = vset.pattern.permute.xlu0 0
  %301 = vperm.xlu0 %300, %v216
  %v302 = vpop.permute.xlu0 %301
  %303 = vset.pattern.permute.xlu0 0
  %304 = vperm.xlu0 %303, %v217
  %v305 = vpop.permute.xlu0 %304
  %306 = vset.pattern.permute.xlu0 0
  %307 = vperm.xlu0 %306, %v218
  %v308 = vpop.permute.xlu0 %307
  %309 = vset.pattern.permute.xlu0 0
  %310 = vperm.xlu0 %309, %v219
  %v311 = vpop.permute.xlu0 %310
  %312 = vset.pattern.permute.xlu0 0
  %313 = vperm.xlu0 %312, %v220
  %v314 = vpop.permute.xlu0 %313
  %315 = vset.pattern.permute.xlu0 0
  %316 = vperm.xlu0 %315, %v221
  %v317 = vpop.permute.xlu0 %316
  %318 = vset.pattern.permute.xlu0 0
  %319 = vperm.xlu0 %318, %v222
  %v320 = vpop.permute.xlu0 %319
  %vm321 = vcmp.eq.s32.totalorder %v224, %v227
  %vm322 = vcmp.eq.s32.totalorder %v224, %v230
  %vm323 = vcmp.eq.s32.totalorder %v224, %v233
  %vm324 = vcmp.eq.s32.totalorder %v224, %v236
  %vm325 = vcmp.eq.s32.totalorder %v224, %v239
  %vm326 = vcmp.eq.s32.totalorder %v224, %v242
  %vm327 = vcmp.eq.s32.totalorder %v224, %v245
  %vm328 = vcmp.eq.s32.totalorder %v224, %v248
  %vm329 = vcmp.eq.s32.totalorder %v224, %v251
  %vm330 = vcmp.eq.s32.totalorder %v224, %v254
  %vm331 = vcmp.eq.s32.totalorder %v224, %v257
  %vm332 = vcmp.eq.s32.totalorder %v224, %v260
  %vm333 = vcmp.eq.s32.totalorder %v224, %v263
  %vm334 = vcmp.eq.s32.totalorder %v224, %v266
  %vm335 = vcmp.eq.s32.totalorder %v224, %v269
  %vm336 = vcmp.eq.s32.totalorder %v224, %v272
  %vm337 = vcmp.eq.s32.totalorder %v224, %v275
  %vm338 = vcmp.eq.s32.totalorder %v224, %v278
  %vm339 = vcmp.eq.s32.totalorder %v224, %v281
  %vm340 = vcmp.eq.s32.totalorder %v224, %v284
  %vm341 = vcmp.eq.s32.totalorder %v224, %v287
  %vm342 = vcmp.eq.s32.totalorder %v224, %v290
  %vm343 = vcmp.eq.s32.totalorder %v224, %v293
  %vm344 = vcmp.eq.s32.totalorder %v224, %v296
  %vm345 = vcmp.eq.s32.totalorder %v224, %v299
  %vm346 = vcmp.eq.s32.totalorder %v224, %v302
  %vm347 = vcmp.eq.s32.totalorder %v224, %v305
  %vm348 = vcmp.eq.s32.totalorder %v224, %v308
  %vm349 = vcmp.eq.s32.totalorder %v224, %v311
  %vm350 = vcmp.eq.s32.totalorder %v224, %v314
  %vm351 = vcmp.eq.s32.totalorder %v224, %v317
  %vm352 = vcmp.eq.s32.totalorder %v224, %v320
  %v353 = vsel %vm321, 1, 0
  %v354 = vsel %vm322, 1, 0
  %v355 = vsel %vm323, 1, 0
  %v356 = vsel %vm324, 1, 0
  %v357 = vsel %vm325, 1, 0
  %v358 = vsel %vm326, 1, 0
  %v359 = vsel %vm327, 1, 0
  %v360 = vsel %vm328, 1, 0
  %v361 = vsel %vm329, 1, 0
  %v362 = vsel %vm330, 1, 0
  %v363 = vsel %vm331, 1, 0
  %v364 = vsel %vm332, 1, 0
  %v365 = vsel %vm333, 1, 0
  %v366 = vsel %vm334, 1, 0
  %v367 = vsel %vm335, 1, 0
  %v368 = vsel %vm336, 1, 0
  %v369 = vsel %vm337, 1, 0
  %v370 = vsel %vm338, 1, 0
  %v371 = vsel %vm339, 1, 0
  %v372 = vsel %vm340, 1, 0
  %v373 = vsel %vm341, 1, 0
  %v374 = vsel %vm342, 1, 0
  %v375 = vsel %vm343, 1, 0
  %v376 = vsel %vm344, 1, 0
  %v377 = vsel %vm345, 1, 0
  %v378 = vsel %vm346, 1, 0
  %v379 = vsel %vm347, 1, 0
  %v380 = vsel %vm348, 1, 0
  %v381 = vsel %vm349, 1, 0
  %v382 = vsel %vm350, 1, 0
  %v383 = vsel %vm351, 1, 0
  %v384 = vsel %vm352, 1, 0
  %v385 = vcvt.s32.f32 %v353
  %v386 = vcvt.s32.f32 %v354
  %v387 = vcvt.s32.f32 %v355
  %v388 = vcvt.s32.f32 %v356
  %v389 = vcvt.s32.f32 %v357
  %v390 = vcvt.s32.f32 %v358
  %v391 = vcvt.s32.f32 %v359
  %v392 = vcvt.s32.f32 %v360
  %v393 = vcvt.s32.f32 %v361
  %v394 = vcvt.s32.f32 %v362
  %v395 = vcvt.s32.f32 %v363
  %v396 = vcvt.s32.f32 %v364
  %v397 = vcvt.s32.f32 %v365
  %v398 = vcvt.s32.f32 %v366
  %v399 = vcvt.s32.f32 %v367
  %v400 = vcvt.s32.f32 %v368
  %v401 = vcvt.s32.f32 %v369
  %v402 = vcvt.s32.f32 %v370
  %v403 = vcvt.s32.f32 %v371
  %v404 = vcvt.s32.f32 %v372
  %v405 = vcvt.s32.f32 %v373
  %v406 = vcvt.s32.f32 %v374
  %v407 = vcvt.s32.f32 %v375
  %v408 = vcvt.s32.f32 %v376
  %v409 = vcvt.s32.f32 %v377
  %v410 = vcvt.s32.f32 %v378
  %v411 = vcvt.s32.f32 %v379
  %v412 = vcvt.s32.f32 %v380
  %v413 = vcvt.s32.f32 %v381
  %v414 = vcvt.s32.f32 %v382
  %v415 = vcvt.s32.f32 %v383
  %v416 = vcvt.s32.f32 %v384
  %vm417 = vcmask 523264
  %v419 = vsel %vm417, %v385, 0
  %v422 = vsel %vm417, %v386, 0
  %v425 = vsel %vm417, %v387, 0
  %v428 = vsel %vm417, %v388, 0
  %v431 = vsel %vm417, %v389, 0
  %v434 = vsel %vm417, %v390, 0
  %v437 = vsel %vm417, %v391, 0
  %v440 = vsel %vm417, %v392, 0
  %v443 = vsel %vm417, %v393, 0
  %v446 = vsel %vm417, %v394, 0
  %v449 = vsel %vm417, %v395, 0
  %v452 = vsel %vm417, %v396, 0
  %v455 = vsel %vm417, %v397, 0
  %v458 = vsel %vm417, %v398, 0
  %v461 = vsel %vm417, %v399, 0
  %v464 = vsel %vm417, %v400, 0
  %v467 = vsel %vm417, %v401, 0
  %v470 = vsel %vm417, %v402, 0
  %v473 = vsel %vm417, %v403, 0
  %v476 = vsel %vm417, %v404, 0
  %v479 = vsel %vm417, %v405, 0
  %v482 = vsel %vm417, %v406, 0
  %v485 = vsel %vm417, %v407, 0
  %v488 = vsel %vm417, %v408, 0
  %v491 = vsel %vm417, %v409, 0
  %v494 = vsel %vm417, %v410, 0
  %v497 = vsel %vm417, %v411, 0
  %v500 = vsel %vm417, %v412, 0
  %v503 = vsel %vm417, %v413, 0
  %v506 = vsel %vm417, %v414, 0
  %v509 = vsel %vm417, %v415, 0
  %v512 = vsel %vm417, %v416, 0
  %514 = vmatprep.subr.mxu0 0.0
  %515 = vmatpush1.msra.mxu0 %v183
  %516 = vmatprep.subr.mxu0 0.0
  %517 = vmatpush1.msra.mxu0 %v184
  %518 = vmatprep.subr.mxu0 0.0
  %519 = vmatpush1.msra.mxu0 %v185
  %520 = vmatprep.subr.mxu0 0.0
  %521 = vmatpush1.msra.mxu0 %v186
  %522 = vmatprep.subr.mxu0 0.0
  %523 = vmatpush1.msra.mxu0 %v187
  %524 = vmatprep.subr.mxu0 0.0
  %525 = vmatpush1.msra.mxu0 %v188
  %526 = vmatprep.subr.mxu0 0.0
  %527 = vmatpush1.msra.mxu0 %v189
  %528 = vmatprep.subr.mxu0 0.0
  %529 = vmatpush1.msra.mxu0 %v190
  %530 = vmatprep.subr.mxu0 0.0
  %531 = vmatpush1.msra.mxu0 0.0
  %532 = vmatprep.subr.mxu0 0.0
  %533 = vmatpush1.msra.mxu0 0.0
  %534 = vmatprep.subr.mxu0 0.0
  %535 = vmatpush1.msra.mxu0 0.0
  %536 = vmatprep.subr.mxu0 0.0
  %537 = vmatpush1.msra.mxu0 0.0
  %538 = vmatprep.subr.mxu0 0.0
  %539 = vmatpush1.msra.mxu0 0.0
  %540 = vmatprep.subr.mxu0 0.0
  %541 = vmatpush1.msra.mxu0 0.0
  %542 = vmatprep.subr.mxu0 0.0
  %543 = vmatpush1.msra.mxu0 0.0
  %544 = vmatprep.subr.mxu0 0.0
  %545 = vmatpush1.msra.mxu0 0.0
  %546 = vmatprep.subr.mxu0 0.0
  %547 = vmatpush1.msra.mxu0 0.0
  %548 = vmatprep.subr.mxu0 0.0
  %549 = vmatpush1.msra.mxu0 0.0
  %550 = vmatprep.subr.mxu0 0.0
  %551 = vmatpush1.msra.mxu0 0.0
  %552 = vmatprep.subr.mxu0 0.0
  %553 = vmatpush1.msra.mxu0 0.0
  %554 = vmatprep.subr.mxu0 0.0
  %555 = vmatpush1.msra.mxu0 0.0
  %556 = vmatprep.subr.mxu0 0.0
  %557 = vmatpush1.msra.mxu0 0.0
  %558 = vmatprep.subr.mxu0 0.0
  %559 = vmatpush1.msra.mxu0 0.0
  %560 = vmatprep.subr.mxu0 0.0
  %561 = vmatpush1.msra.mxu0 0.0
  %562 = vmatprep.subr.mxu0 0.0
  %563 = vmatpush1.msra.mxu0 0.0
  %564 = vmatprep.subr.mxu0 0.0
  %565 = vmatpush1.msra.mxu0 0.0
  %566 = vmatprep.subr.mxu0 0.0
  %567 = vmatpush1.msra.mxu0 0.0
  %568 = vmatprep.subr.mxu0 0.0
  %569 = vmatpush1.msra.mxu0 0.0
  %570 = vmatprep.subr.mxu0 0.0
  %571 = vmatpush1.msra.mxu0 0.0
  %572 = vmatprep.subr.mxu0 0.0
  %573 = vmatpush1.msra.mxu0 0.0
  %574 = vmatprep.subr.mxu0 0.0
  %575 = vmatpush1.msra.mxu0 0.0
  %576 = vmatprep.subr.mxu0 0.0
  %577 = vmatpush1.msra.mxu0 0.0
  %578 = vmatprep.mubr.f32.mxu0 0.0
  %579 = vmatmul.mubr.f32.gmra.mrb[0].mxu0 %v419
  %v580 = vpop.f32.mrb[0].mxu0
  %v581 = vadd.f32 0.0, %v580
  %v582 = vpop.f32.mrb[0].mxu0
  %583 = vmatprep.mubr.f32.mxu0 0.0
  %584 = vmatmul.mubr.f32.gmra.mrb[0].mxu0 %v422
  %v585 = vpop.f32.mrb[0].mxu0
  %v586 = vadd.f32 0.0, %v585
  %v587 = vpop.f32.mrb[0].mxu0
  %588 = vmatprep.mubr.f32.mxu0 0.0
  %589 = vmatmul.mubr.f32.gmra.mrb[0].mxu0 %v425
  %v590 = vpop.f32.mrb[0].mxu0
  %v591 = vadd.f32 0.0, %v590
  %v592 = vpop.f32.mrb[0].mxu0
  %593 = vmatprep.mubr.f32.mxu0 0.0
  %594 = vmatmul.mubr.f32.gmra.mrb[0].mxu0 %v428
  %v595 = vpop.f32.mrb[0].mxu0
  %v596 = vadd.f32 0.0, %v595
  %v597 = vpop.f32.mrb[0].mxu0
  %598 = vmatprep.mubr.f32.mxu0 0.0
  %599 = vmatmul.mubr.f32.gmra.mrb[0].mxu0 %v431
  %v600 = vpop.f32.mrb[0].mxu0
  %v601 = vadd.f32 0.0, %v600
  %v602 = vpop.f32.mrb[0].mxu0
  %603 = vmatprep.mubr.f32.mxu0 0.0
  %604 = vmatmul.mubr.f32.gmra.mrb[0].mxu0 %v434
  %v605 = vpop.f32.mrb[0].mxu0
  %v606 = vadd.f32 0.0, %v605
  %v607 = vpop.f32.mrb[0].mxu0
  %608 = vmatprep.mubr.f32.mxu0 0.0
  %609 = vmatmul.mubr.f32.gmra.mrb[0].mxu0 %v437
  %v610 = vpop.f32.mrb[0].mxu0
  %v611 = vadd.f32 0.0, %v610
  %v612 = vpop.f32.mrb[0].mxu0
  %613 = vmatprep.mubr.f32.mxu0 0.0
  %614 = vmatmul.mubr.f32.gmra.mrb[0].mxu0 %v440
  %v615 = vpop.f32.mrb[0].mxu0
  %v616 = vadd.f32 0.0, %v615
  %v617 = vpop.f32.mrb[0].mxu0
  %618 = vmatprep.mubr.f32.mxu0 0.0
  %619 = vmatmul.mubr.f32.gmra.mrb[0].mxu0 %v443
  %v620 = vpop.f32.mrb[0].mxu0
  %v621 = vadd.f32 0.0, %v620
  %v622 = vpop.f32.mrb[0].mxu0
  %623 = vmatprep.mubr.f32.mxu0 0.0
  %624 = vmatmul.mubr.f32.gmra.mrb[0].mxu0 %v446
  %v625 = vpop.f32.mrb[0].mxu0
  %v626 = vadd.f32 0.0, %v625
  %v627 = vpop.f32.mrb[0].mxu0
  %628 = vmatprep.mubr.f32.mxu0 0.0
  %629 = vmatmul.mubr.f32.gmra.mrb[0].mxu0 %v449
  %v630 = vpop.f32.mrb[0].mxu0
  %v631 = vadd.f32 0.0, %v630
  %v632 = vpop.f32.mrb[0].mxu0
  %633 = vmatprep.mubr.f32.mxu0 0.0
  %634 = vmatmul.mubr.f32.gmra.mrb[0].mxu0 %v452
  %v635 = vpop.f32.mrb[0].mxu0
  %v636 = vadd.f32 0.0, %v635
  %v637 = vpop.f32.mrb[0].mxu0
  %638 = vmatprep.mubr.f32.mxu0 0.0
  %639 = vmatmul.mubr.f32.gmra.mrb[0].mxu0 %v455
  %v640 = vpop.f32.mrb[0].mxu0
  %v641 = vadd.f32 0.0, %v640
  %v642 = vpop.f32.mrb[0].mxu0
  %643 = vmatprep.mubr.f32.mxu0 0.0
  %644 = vmatmul.mubr.f32.gmra.mrb[0].mxu0 %v458
  %v645 = vpop.f32.mrb[0].mxu0
  %v646 = vadd.f32 0.0, %v645
  %v647 = vpop.f32.mrb[0].mxu0
  %648 = vmatprep.mubr.f32.mxu0 0.0
  %649 = vmatmul.mubr.f32.gmra.mrb[0].mxu0 %v461
  %v650 = vpop.f32.mrb[0].mxu0
  %v651 = vadd.f32 0.0, %v650
  %v652 = vpop.f32.mrb[0].mxu0
  %653 = vmatprep.mubr.f32.mxu0 0.0
  %654 = vmatmul.mubr.f32.gmra.mrb[0].mxu0 %v464
  %v655 = vpop.f32.mrb[0].mxu0
  %v656 = vadd.f32 0.0, %v655
  %v657 = vpop.f32.mrb[0].mxu0
  %658 = vmatprep.mubr.f32.mxu0 0.0
  %659 = vmatmul.mubr.f32.gmra.mrb[0].mxu0 %v467
  %v660 = vpop.f32.mrb[0].mxu0
  %v661 = vadd.f32 0.0, %v660
  %v662 = vpop.f32.mrb[0].mxu0
  %663 = vmatprep.mubr.f32.mxu0 0.0
  %664 = vmatmul.mubr.f32.gmra.mrb[0].mxu0 %v470
  %v665 = vpop.f32.mrb[0].mxu0
  %v666 = vadd.f32 0.0, %v665
  %v667 = vpop.f32.mrb[0].mxu0
  %668 = vmatprep.mubr.f32.mxu0 0.0
  %669 = vmatmul.mubr.f32.gmra.mrb[0].mxu0 %v473
  %v670 = vpop.f32.mrb[0].mxu0
  %v671 = vadd.f32 0.0, %v670
  %v672 = vpop.f32.mrb[0].mxu0
  %673 = vmatprep.mubr.f32.mxu0 0.0
  %674 = vmatmul.mubr.f32.gmra.mrb[0].mxu0 %v476
  %v675 = vpop.f32.mrb[0].mxu0
  %v676 = vadd.f32 0.0, %v675
  %v677 = vpop.f32.mrb[0].mxu0
  %678 = vmatprep.mubr.f32.mxu0 0.0
  %679 = vmatmul.mubr.f32.gmra.mrb[0].mxu0 %v479
  %v680 = vpop.f32.mrb[0].mxu0
  %v681 = vadd.f32 0.0, %v680
  %v682 = vpop.f32.mrb[0].mxu0
  %683 = vmatprep.mubr.f32.mxu0 0.0
  %684 = vmatmul.mubr.f32.gmra.mrb[0].mxu0 %v482
  %v685 = vpop.f32.mrb[0].mxu0
  %v686 = vadd.f32 0.0, %v685
  %v687 = vpop.f32.mrb[0].mxu0
  %688 = vmatprep.mubr.f32.mxu0 0.0
  %689 = vmatmul.mubr.f32.gmra.mrb[0].mxu0 %v485
  %v690 = vpop.f32.mrb[0].mxu0
  %v691 = vadd.f32 0.0, %v690
  %v692 = vpop.f32.mrb[0].mxu0
  %693 = vmatprep.mubr.f32.mxu0 0.0
  %694 = vmatmul.mubr.f32.gmra.mrb[0].mxu0 %v488
  %v695 = vpop.f32.mrb[0].mxu0
  %v696 = vadd.f32 0.0, %v695
  %v697 = vpop.f32.mrb[0].mxu0
  %698 = vmatprep.mubr.f32.mxu0 0.0
  %699 = vmatmul.mubr.f32.gmra.mrb[0].mxu0 %v491
  %v700 = vpop.f32.mrb[0].mxu0
  %v701 = vadd.f32 0.0, %v700
  %v702 = vpop.f32.mrb[0].mxu0
  %703 = vmatprep.mubr.f32.mxu0 0.0
  %704 = vmatmul.mubr.f32.gmra.mrb[0].mxu0 %v494
  %v705 = vpop.f32.mrb[0].mxu0
  %v706 = vadd.f32 0.0, %v705
  %v707 = vpop.f32.mrb[0].mxu0
  %708 = vmatprep.mubr.f32.mxu0 0.0
  %709 = vmatmul.mubr.f32.gmra.mrb[0].mxu0 %v497
  %v710 = vpop.f32.mrb[0].mxu0
  %v711 = vadd.f32 0.0, %v710
  %v712 = vpop.f32.mrb[0].mxu0
  %713 = vmatprep.mubr.f32.mxu0 0.0
  %714 = vmatmul.mubr.f32.gmra.mrb[0].mxu0 %v500
  %v715 = vpop.f32.mrb[0].mxu0
  %v716 = vadd.f32 0.0, %v715
  %v717 = vpop.f32.mrb[0].mxu0
  %718 = vmatprep.mubr.f32.mxu0 0.0
  %719 = vmatmul.mubr.f32.gmra.mrb[0].mxu0 %v503
  %v720 = vpop.f32.mrb[0].mxu0
  %v721 = vadd.f32 0.0, %v720
  %v722 = vpop.f32.mrb[0].mxu0
  %723 = vmatprep.mubr.f32.mxu0 0.0
  %724 = vmatmul.mubr.f32.gmra.mrb[0].mxu0 %v506
  %v725 = vpop.f32.mrb[0].mxu0
  %v726 = vadd.f32 0.0, %v725
  %v727 = vpop.f32.mrb[0].mxu0
  %728 = vmatprep.mubr.f32.mxu0 0.0
  %729 = vmatmul.mubr.f32.gmra.mrb[0].mxu0 %v509
  %v730 = vpop.f32.mrb[0].mxu0
  %v731 = vadd.f32 0.0, %v730
  %v732 = vpop.f32.mrb[0].mxu0
  %733 = vmatprep.mubr.f32.mxu0 0.0
  %734 = vmatmul.mubr.f32.gmra.mrb[0].mxu0 %v512
  %v735 = vpop.f32.mrb[0].mxu0
  %v736 = vadd.f32 0.0, %v735
  %v737 = vpop.f32.mrb[0].mxu0
  %738 = vdwg.mxu0
  %739 = vst.msk [vmem:[%s5] sm:$0xff] %vm41, %v581
  %740 = vst.msk [vmem:[%s5 + $0x8] sm:$0xff] %vm41, %v586
  %741 = vst.msk [vmem:[%s5 + $0x10] sm:$0xff] %vm41, %v591
  %742 = vst.msk [vmem:[%s5 + $0x18] sm:$0xff] %vm41, %v596
  %743 = vst.msk [vmem:[%s5 + $0x20] sm:$0xff] %vm41, %v601
  %744 = vst.msk [vmem:[%s5 + $0x28] sm:$0xff] %vm41, %v606
  %745 = vst.msk [vmem:[%s5 + $0x30] sm:$0xff] %vm41, %v611
  %746 = vst.msk [vmem:[%s5 + $0x38] sm:$0xff] %vm41, %v616
  %747 = vst.msk [vmem:[%s5 + $0x40] sm:$0xff] %vm41, %v621
  %748 = vst.msk [vmem:[%s5 + $0x48] sm:$0xff] %vm41, %v626
  %749 = vst.msk [vmem:[%s5 + $0x50] sm:$0xff] %vm41, %v631
  %750 = vst.msk [vmem:[%s5 + $0x58] sm:$0xff] %vm41, %v636
  %751 = vst.msk [vmem:[%s5 + $0x60] sm:$0xff] %vm41, %v641
  %752 = vst.msk [vmem:[%s5 + $0x68] sm:$0xff] %vm41, %v646
  %753 = vst.msk [vmem:[%s5 + $0x70] sm:$0xff] %vm41, %v651
  %754 = vst.msk [vmem:[%s5 + $0x78] sm:$0xff] %vm41, %v656
  %755 = vst.msk [vmem:[%s5 + $0x80] sm:$0xff] %vm41, %v661
  %756 = vst.msk [vmem:[%s5 + $0x88] sm:$0xff] %vm41, %v666
  %757 = vst.msk [vmem:[%s5 + $0x90] sm:$0xff] %vm41, %v671
  %758 = vst.msk [vmem:[%s5 + $0x98] sm:$0xff] %vm41, %v676
  %759 = vst.msk [vmem:[%s5 + $0xa0] sm:$0xff] %vm41, %v681
  %760 = vst.msk [vmem:[%s5 + $0xa8] sm:$0xff] %vm41, %v686
  %761 = vst.msk [vmem:[%s5 + $0xb0] sm:$0xff] %vm41, %v691
  %762 = vst.msk [vmem:[%s5 + $0xb8] sm:$0xff] %vm41, %v696
  %763 = vst.msk [vmem:[%s5 + $0xc0] sm:$0xff] %vm41, %v701
  %764 = vst.msk [vmem:[%s5 + $0xc8] sm:$0xff] %vm41, %v706
  %765 = vst.msk [vmem:[%s5 + $0xd0] sm:$0xff] %vm41, %v711
  %766 = vst.msk [vmem:[%s5 + $0xd8] sm:$0xff] %vm41, %v716
  %767 = vst.msk [vmem:[%s5 + $0xe0] sm:$0xff] %vm41, %v721
  %768 = vst.msk [vmem:[%s5 + $0xe8] sm:$0xff] %vm41, %v726
  %769 = vst.msk [vmem:[%s5 + $0xf0] sm:$0xff] %vm41, %v731
  %770 = vst.msk [vmem:[%s5 + $0xf8] sm:$0xff] %vm41, %v736
  %v771 = vld [vmem:[%s2] sm:$0xff]
  %v772 = vld [vmem:[%s2 + $0x8] sm:$0xff]
  %v773 = vld [vmem:[%s2 + $0x10] sm:$0xff]
  %v774 = vld [vmem:[%s2 + $0x18] sm:$0xff]
  %v775 = vld [vmem:[%s2 + $0x20] sm:$0xff]
  %v776 = vld [vmem:[%s2 + $0x28] sm:$0xff]
  %v777 = vld [vmem:[%s2 + $0x30] sm:$0xff]
  %v778 = vld [vmem:[%s2 + $0x38] sm:$0xff]
  %779 = vmatprep.subr.mxu0 0.0
  %780 = vmatpush1.msra.mxu0 %v771
  %781 = vmatprep.subr.mxu0 0.0
  %782 = vmatpush1.msra.mxu0 %v772
  %783 = vmatprep.subr.mxu0 0.0
  %784 = vmatpush1.msra.mxu0 %v773
  %785 = vmatprep.subr.mxu0 0.0
  %786 = vmatpush1.msra.mxu0 %v774
  %787 = vmatprep.subr.mxu0 0.0
  %788 = vmatpush1.msra.mxu0 %v775
  %789 = vmatprep.subr.mxu0 0.0
  %790 = vmatpush1.msra.mxu0 %v776
  %791 = vmatprep.subr.mxu0 0.0
  %792 = vmatpush1.msra.mxu0 %v777
  %793 = vmatprep.subr.mxu0 0.0
  %794 = vmatpush1.msra.mxu0 %v778
  %795 = vmatprep.subr.mxu0 0.0
  %796 = vmatpush1.msra.mxu0 0.0
  %797 = vmatprep.subr.mxu0 0.0
  %798 = vmatpush1.msra.mxu0 0.0
  %799 = vmatprep.subr.mxu0 0.0
  %800 = vmatpush1.msra.mxu0 0.0
  %801 = vmatprep.subr.mxu0 0.0
  %802 = vmatpush1.msra.mxu0 0.0
  %803 = vmatprep.subr.mxu0 0.0
  %804 = vmatpush1.msra.mxu0 0.0
  %805 = vmatprep.subr.mxu0 0.0
  %806 = vmatpush1.msra.mxu0 0.0
  %807 = vmatprep.subr.mxu0 0.0
  %808 = vmatpush1.msra.mxu0 0.0
  %809 = vmatprep.subr.mxu0 0.0
  %810 = vmatpush1.msra.mxu0 0.0
  %811 = vmatprep.subr.mxu0 0.0
  %812 = vmatpush1.msra.mxu0 0.0
  %813 = vmatprep.subr.mxu0 0.0
  %814 = vmatpush1.msra.mxu0 0.0
  %815 = vmatprep.subr.mxu0 0.0
  %816 = vmatpush1.msra.mxu0 0.0
  %817 = vmatprep.subr.mxu0 0.0
  %818 = vmatpush1.msra.mxu0 0.0
  %819 = vmatprep.subr.mxu0 0.0
  %820 = vmatpush1.msra.mxu0 0.0
  %821 = vmatprep.subr.mxu0 0.0
  %822 = vmatpush1.msra.mxu0 0.0
  %823 = vmatprep.subr.mxu0 0.0
  %824 = vmatpush1.msra.mxu0 0.0
  %825 = vmatprep.subr.mxu0 0.0
  %826 = vmatpush1.msra.mxu0 0.0
  %827 = vmatprep.subr.mxu0 0.0
  %828 = vmatpush1.msra.mxu0 0.0
  %829 = vmatprep.subr.mxu0 0.0
  %830 = vmatpush1.msra.mxu0 0.0
  %831 = vmatprep.subr.mxu0 0.0
  %832 = vmatpush1.msra.mxu0 0.0
  %833 = vmatprep.subr.mxu0 0.0
  %834 = vmatpush1.msra.mxu0 0.0
  %835 = vmatprep.subr.mxu0 0.0
  %836 = vmatpush1.msra.mxu0 0.0
  %837 = vmatprep.subr.mxu0 0.0
  %838 = vmatpush1.msra.mxu0 0.0
  %839 = vmatprep.subr.mxu0 0.0
  %840 = vmatpush1.msra.mxu0 0.0
  %841 = vmatprep.subr.mxu0 0.0
  %842 = vmatpush1.msra.mxu0 0.0
  %843 = vmatprep.mubr.f32.mxu0 0.0
  %844 = vmatmul.mubr.f32.gmra.mrb[0].mxu0 %v419
  %v845 = vpop.f32.mrb[0].mxu0
  %v846 = vadd.f32 0.0, %v845
  %v847 = vpop.f32.mrb[0].mxu0
  %848 = vmatprep.mubr.f32.mxu0 0.0
  %849 = vmatmul.mubr.f32.gmra.mrb[0].mxu0 %v422
  %v850 = vpop.f32.mrb[0].mxu0
  %v851 = vadd.f32 0.0, %v850
  %v852 = vpop.f32.mrb[0].mxu0
  %853 = vmatprep.mubr.f32.mxu0 0.0
  %854 = vmatmul.mubr.f32.gmra.mrb[0].mxu0 %v425
  %v855 = vpop.f32.mrb[0].mxu0
  %v856 = vadd.f32 0.0, %v855
  %v857 = vpop.f32.mrb[0].mxu0
  %858 = vmatprep.mubr.f32.mxu0 0.0
  %859 = vmatmul.mubr.f32.gmra.mrb[0].mxu0 %v428
  %v860 = vpop.f32.mrb[0].mxu0
  %v861 = vadd.f32 0.0, %v860
  %v862 = vpop.f32.mrb[0].mxu0
  %863 = vmatprep.mubr.f32.mxu0 0.0
  %864 = vmatmul.mubr.f32.gmra.mrb[0].mxu0 %v431
  %v865 = vpop.f32.mrb[0].mxu0
  %v866 = vadd.f32 0.0, %v865
  %v867 = vpop.f32.mrb[0].mxu0
  %868 = vmatprep.mubr.f32.mxu0 0.0
  %869 = vmatmul.mubr.f32.gmra.mrb[0].mxu0 %v434
  %v870 = vpop.f32.mrb[0].mxu0
  %v871 = vadd.f32 0.0, %v870
  %v872 = vpop.f32.mrb[0].mxu0
  %873 = vmatprep.mubr.f32.mxu0 0.0
  %874 = vmatmul.mubr.f32.gmra.mrb[0].mxu0 %v437
  %v875 = vpop.f32.mrb[0].mxu0
  %v876 = vadd.f32 0.0, %v875
  %v877 = vpop.f32.mrb[0].mxu0
  %878 = vmatprep.mubr.f32.mxu0 0.0
  %879 = vmatmul.mubr.f32.gmra.mrb[0].mxu0 %v440
  %v880 = vpop.f32.mrb[0].mxu0
  %v881 = vadd.f32 0.0, %v880
  %v882 = vpop.f32.mrb[0].mxu0
  %883 = vmatprep.mubr.f32.mxu0 0.0
  %884 = vmatmul.mubr.f32.gmra.mrb[0].mxu0 %v443
  %v885 = vpop.f32.mrb[0].mxu0
  %v886 = vadd.f32 0.0, %v885
  %v887 = vpop.f32.mrb[0].mxu0
  %888 = vmatprep.mubr.f32.mxu0 0.0
  %889 = vmatmul.mubr.f32.gmra.mrb[0].mxu0 %v446
  %v890 = vpop.f32.mrb[0].mxu0
  %v891 = vadd.f32 0.0, %v890
  %v892 = vpop.f32.mrb[0].mxu0
  %893 = vmatprep.mubr.f32.mxu0 0.0
  %894 = vmatmul.mubr.f32.gmra.mrb[0].mxu0 %v449
  %v895 = vpop.f32.mrb[0].mxu0
  %v896 = vadd.f32 0.0, %v895
  %v897 = vpop.f32.mrb[0].mxu0
  %898 = vmatprep.mubr.f32.mxu0 0.0
  %899 = vmatmul.mubr.f32.gmra.mrb[0].mxu0 %v452
  %v900 = vpop.f32.mrb[0].mxu0
  %v901 = vadd.f32 0.0, %v900
  %v902 = vpop.f32.mrb[0].mxu0
  %903 = vmatprep.mubr.f32.mxu0 0.0
  %904 = vmatmul.mubr.f32.gmra.mrb[0].mxu0 %v455
  %v905 = vpop.f32.mrb[0].mxu0
  %v906 = vadd.f32 0.0, %v905
  %v907 = vpop.f32.mrb[0].mxu0
  %908 = vmatprep.mubr.f32.mxu0 0.0
  %909 = vmatmul.mubr.f32.gmra.mrb[0].mxu0 %v458
  %v910 = vpop.f32.mrb[0].mxu0
  %v911 = vadd.f32 0.0, %v910
  %v912 = vpop.f32.mrb[0].mxu0
  %913 = vmatprep.mubr.f32.mxu0 0.0
  %914 = vmatmul.mubr.f32.gmra.mrb[0].mxu0 %v461
  %v915 = vpop.f32.mrb[0].mxu0
  %v916 = vadd.f32 0.0, %v915
  %v917 = vpop.f32.mrb[0].mxu0
  %918 = vmatprep.mubr.f32.mxu0 0.0
  %919 = vmatmul.mubr.f32.gmra.mrb[0].mxu0 %v464
  %v920 = vpop.f32.mrb[0].mxu0
  %v921 = vadd.f32 0.0, %v920
  %v922 = vpop.f32.mrb[0].mxu0
  %923 = vmatprep.mubr.f32.mxu0 0.0
  %924 = vmatmul.mubr.f32.gmra.mrb[0].mxu0 %v467
  %v925 = vpop.f32.mrb[0].mxu0
  %v926 = vadd.f32 0.0, %v925
  %v927 = vpop.f32.mrb[0].mxu0
  %928 = vmatprep.mubr.f32.mxu0 0.0
  %929 = vmatmul.mubr.f32.gmra.mrb[0].mxu0 %v470
  %v930 = vpop.f32.mrb[0].mxu0
  %v931 = vadd.f32 0.0, %v930
  %v932 = vpop.f32.mrb[0].mxu0
  %933 = vmatprep.mubr.f32.mxu0 0.0
  %934 = vmatmul.mubr.f32.gmra.mrb[0].mxu0 %v473
  %v935 = vpop.f32.mrb[0].mxu0
  %v936 = vadd.f32 0.0, %v935
  %v937 = vpop.f32.mrb[0].mxu0
  %938 = vmatprep.mubr.f32.mxu0 0.0
  %939 = vmatmul.mubr.f32.gmra.mrb[0].mxu0 %v476
  %v940 = vpop.f32.mrb[0].mxu0
  %v941 = vadd.f32 0.0, %v940
  %v942 = vpop.f32.mrb[0].mxu0
  %943 = vmatprep.mubr.f32.mxu0 0.0
  %944 = vmatmul.mubr.f32.gmra.mrb[0].mxu0 %v479
  %v945 = vpop.f32.mrb[0].mxu0
  %v946 = vadd.f32 0.0, %v945
  %v947 = vpop.f32.mrb[0].mxu0
  %948 = vmatprep.mubr.f32.mxu0 0.0
  %949 = vmatmul.mubr.f32.gmra.mrb[0].mxu0 %v482
  %v950 = vpop.f32.mrb[0].mxu0
  %v951 = vadd.f32 0.0, %v950
  %v952 = vpop.f32.mrb[0].mxu0
  %953 = vmatprep.mubr.f32.mxu0 0.0
  %954 = vmatmul.mubr.f32.gmra.mrb[0].mxu0 %v485
  %v955 = vpop.f32.mrb[0].mxu0
  %v956 = vadd.f32 0.0, %v955
  %v957 = vpop.f32.mrb[0].mxu0
  %958 = vmatprep.mubr.f32.mxu0 0.0
  %959 = vmatmul.mubr.f32.gmra.mrb[0].mxu0 %v488
  %v960 = vpop.f32.mrb[0].mxu0
  %v961 = vadd.f32 0.0, %v960
  %v962 = vpop.f32.mrb[0].mxu0
  %963 = vmatprep.mubr.f32.mxu0 0.0
  %964 = vmatmul.mubr.f32.gmra.mrb[0].mxu0 %v491
  %v965 = vpop.f32.mrb[0].mxu0
  %v966 = vadd.f32 0.0, %v965
  %v967 = vpop.f32.mrb[0].mxu0
  %968 = vmatprep.mubr.f32.mxu0 0.0
  %969 = vmatmul.mubr.f32.gmra.mrb[0].mxu0 %v494
  %v970 = vpop.f32.mrb[0].mxu0
  %v971 = vadd.f32 0.0, %v970
  %v972 = vpop.f32.mrb[0].mxu0
  %973 = vmatprep.mubr.f32.mxu0 0.0
  %974 = vmatmul.mubr.f32.gmra.mrb[0].mxu0 %v497
  %v975 = vpop.f32.mrb[0].mxu0
  %v976 = vadd.f32 0.0, %v975
  %v977 = vpop.f32.mrb[0].mxu0
  %978 = vmatprep.mubr.f32.mxu0 0.0
  %979 = vmatmul.mubr.f32.gmra.mrb[0].mxu0 %v500
  %v980 = vpop.f32.mrb[0].mxu0
  %v981 = vadd.f32 0.0, %v980
  %v982 = vpop.f32.mrb[0].mxu0
  %983 = vmatprep.mubr.f32.mxu0 0.0
  %984 = vmatmul.mubr.f32.gmra.mrb[0].mxu0 %v503
  %v985 = vpop.f32.mrb[0].mxu0
  %v986 = vadd.f32 0.0, %v985
  %v987 = vpop.f32.mrb[0].mxu0
  %988 = vmatprep.mubr.f32.mxu0 0.0
  %989 = vmatmul.mubr.f32.gmra.mrb[0].mxu0 %v506
  %v990 = vpop.f32.mrb[0].mxu0
  %v991 = vadd.f32 0.0, %v990
  %v992 = vpop.f32.mrb[0].mxu0
  %993 = vmatprep.mubr.f32.mxu0 0.0
  %994 = vmatmul.mubr.f32.gmra.mrb[0].mxu0 %v509
  %v995 = vpop.f32.mrb[0].mxu0
  %v996 = vadd.f32 0.0, %v995
  %v997 = vpop.f32.mrb[0].mxu0
  %998 = vmatprep.mubr.f32.mxu0 0.0
  %999 = vmatmul.mubr.f32.gmra.mrb[0].mxu0 %v512
  %v1000 = vpop.f32.mrb[0].mxu0
  %v1001 = vadd.f32 0.0, %v1000
  %v1002 = vpop.f32.mrb[0].mxu0
  %1003 = vdwg.mxu0
  %1004 = vst.msk [vmem:[%s6] sm:$0xff] %vm41, %v846
  %1005 = vst.msk [vmem:[%s6 + $0x8] sm:$0xff] %vm41, %v851
  %1006 = vst.msk [vmem:[%s6 + $0x10] sm:$0xff] %vm41, %v856
  %1007 = vst.msk [vmem:[%s6 + $0x18] sm:$0xff] %vm41, %v861
  %1008 = vst.msk [vmem:[%s6 + $0x20] sm:$0xff] %vm41, %v866
  %1009 = vst.msk [vmem:[%s6 + $0x28] sm:$0xff] %vm41, %v871
  %1010 = vst.msk [vmem:[%s6 + $0x30] sm:$0xff] %vm41, %v876
  %1011 = vst.msk [vmem:[%s6 + $0x38] sm:$0xff] %vm41, %v881
  %1012 = vst.msk [vmem:[%s6 + $0x40] sm:$0xff] %vm41, %v886
  %1013 = vst.msk [vmem:[%s6 + $0x48] sm:$0xff] %vm41, %v891
  %1014 = vst.msk [vmem:[%s6 + $0x50] sm:$0xff] %vm41, %v896
  %1015 = vst.msk [vmem:[%s6 + $0x58] sm:$0xff] %vm41, %v901
  %1016 = vst.msk [vmem:[%s6 + $0x60] sm:$0xff] %vm41, %v906
  %1017 = vst.msk [vmem:[%s6 + $0x68] sm:$0xff] %vm41, %v911
  %1018 = vst.msk [vmem:[%s6 + $0x70] sm:$0xff] %vm41, %v916
  %1019 = vst.msk [vmem:[%s6 + $0x78] sm:$0xff] %vm41, %v921
  %1020 = vst.msk [vmem:[%s6 + $0x80] sm:$0xff] %vm41, %v926
  %1021 = vst.msk [vmem:[%s6 + $0x88] sm:$0xff] %vm41, %v931
  %1022 = vst.msk [vmem:[%s6 + $0x90] sm:$0xff] %vm41, %v936
  %1023 = vst.msk [vmem:[%s6 + $0x98] sm:$0xff] %vm41, %v941
  %1024 = vst.msk [vmem:[%s6 + $0xa0] sm:$0xff] %vm41, %v946
  %1025 = vst.msk [vmem:[%s6 + $0xa8] sm:$0xff] %vm41, %v951
  %1026 = vst.msk [vmem:[%s6 + $0xb0] sm:$0xff] %vm41, %v956
  %1027 = vst.msk [vmem:[%s6 + $0xb8] sm:$0xff] %vm41, %v961
  %1028 = vst.msk [vmem:[%s6 + $0xc0] sm:$0xff] %vm41, %v966
  %1029 = vst.msk [vmem:[%s6 + $0xc8] sm:$0xff] %vm41, %v971
  %1030 = vst.msk [vmem:[%s6 + $0xd0] sm:$0xff] %vm41, %v976
  %1031 = vst.msk [vmem:[%s6 + $0xd8] sm:$0xff] %vm41, %v981
  %1032 = vst.msk [vmem:[%s6 + $0xe0] sm:$0xff] %vm41, %v986
  %1033 = vst.msk [vmem:[%s6 + $0xe8] sm:$0xff] %vm41, %v991
  %1034 = vst.msk [vmem:[%s6 + $0xf0] sm:$0xff] %vm41, %v996
  %1035 = vst.msk [vmem:[%s6 + $0xf8] sm:$0xff] %vm41, %v1001
  // Predicated region
  $region22: #{hash_code_generator_forward.1} parent=0 // pred_check
    _
  $region23: #{hash_code_generator_forward.1} parent=0 // pred_check_branch
    %1037 = sbr.rel (0) target = $region25
  $region24: #{hash_code_generator_forward.1} parent=0 // pred_region
    _
  $region25: #{hash_code_generator_forward.1} parent=0 // pred_fallthru
    _
  // Predicated region
  $region26: #{hash_code_generator_forward.1} parent=0 // pred_check
    _
  $region27: #{hash_code_generator_forward.1} parent=0 // pred_check_branch
    %1039 = sbr.rel (0) target = $region29
  $region28: #{hash_code_generator_forward.1} parent=0 // pred_region
    _
  $region29: #{hash_code_generator_forward.1} parent=0 // pred_fallthru
    _
  // Predicated region
  $region30: #{hash_code_generator_forward.1} parent=0 // pred_check
    _
  $region31: #{hash_code_generator_forward.1} parent=0 // pred_check_branch
    %1041 = sbr.rel (0) target = $region33
  $region32: #{hash_code_generator_forward.1} parent=0 // pred_region
    _
  $region33: #{hash_code_generator_forward.1} parent=0 // pred_fallthru
    _
  // Predicated region
  $region34: #{hash_code_generator_forward.1} parent=0 // pred_check
    _
  $region35: #{hash_code_generator_forward.1} parent=0 // pred_check_branch
    %1043 = sbr.rel (0) target = $region37
  $region36: #{hash_code_generator_forward.1} parent=0 // pred_region
    _
  $region37: #{hash_code_generator_forward.1} parent=0 // pred_fallthru
    _

</llo_original>
